<compile_context>
chip_gen: v6e
topology: v6e:2x2x1
jax: 0.10.0
libtpu: 0.0.40
codegen_flags: <defaults>
</compile_context>

<pallas_src>
import math

import jax
import jax.numpy as jnp
from jax.experimental import pallas as pl
from jax.experimental.pallas import tpu as pltpu

# Fixed (non-trainable) time constants from DenseDCLLlayer defaults.
ALPHA = 0.9
ALPHAS = 0.85
TAU_M__DT = 1.0 / (1.0 - ALPHA)   # 10.0
TAU_S__DT = 1.0 / (1.0 - ALPHAS)  # ~6.6667

LANE = 128      # TPU lane width: keep every feature (last) dim a multiple.
SUBLANE = 8     # sublane granularity for the batch (second-to-last) dim.


def _round_up(n, m):
    return ((n + m - 1) // m) * m


# ----------------------------------------------------------------------------
# Kernel
# ----------------------------------------------------------------------------
def dcll_dense_kernel(x_ref, eps0_ref, eps1_ref, w_ref, b_ref, w2_ref, b2_ref,
                      spike_ref, pvout_ref, pv_ref, vmem_ref,
                      eps0_new_ref, eps1_new_ref):
    x = x_ref[...]
    # Leaky synaptic / membrane traces (elementwise, VPU) -- kept in f32.
    eps0 = x * TAU_S__DT + ALPHAS * eps0_ref[...]
    eps1 = ALPHA * eps1_ref[...] + eps0 * TAU_M__DT

    # Membrane potential: dense layer on the MXU (bf16 operands, f32 accum).
    vmem = jnp.dot(eps1.astype(w_ref.dtype), w_ref[...],
                   preferred_element_type=jnp.float32) + b_ref[...]

    # Surrogate activation (Sigmoid) and spike (spiking=True -> hard threshold).
    pv = jax.nn.sigmoid(vmem)

    # Local classifier (i2o) readout; lc_dropout=False => identity dropout.
    pvout = jnp.dot(pv.astype(w2_ref.dtype), w2_ref[...],
                    preferred_element_type=jnp.float32) + b2_ref[...]

    spike_ref[...] = (vmem > 0).astype(spike_ref.dtype)
    pvout_ref[...] = pvout
    pv_ref[...] = pv
    vmem_ref[...] = vmem
    eps0_new_ref[...] = eps0
    eps1_new_ref[...] = eps1


# ----------------------------------------------------------------------------
# Wrapper helpers
# ----------------------------------------------------------------------------
def prepare_params(w_i2h, b_i2h, w_i2o, b_i2o, *, matmul_dtype=jnp.bfloat16):
    """One-time prep (hoist out of the timestep loop): transpose, cast to bf16,
    and zero-pad feature dims to multiples of 128 for lane-dense layouts."""
    out_channels, in_channels = w_i2h.shape
    target_size = w_i2o.shape[0]
    cin_p = _round_up(in_channels, LANE)
    cout_p = _round_up(out_channels, LANE)
    ct_p = _round_up(target_size, LANE)

    w1 = jnp.zeros((cin_p, cout_p), matmul_dtype).at[:in_channels, :out_channels].set(
        jnp.asarray(w_i2h, jnp.float32).T.astype(matmul_dtype))
    w2 = jnp.zeros((cout_p, ct_p), matmul_dtype).at[:out_channels, :target_size].set(
        jnp.asarray(w_i2o, jnp.float32).T.astype(matmul_dtype))
    b1 = jnp.zeros((1, cout_p), jnp.float32).at[0, :out_channels].set(
        jnp.asarray(b_i2h, jnp.float32))
    b2 = jnp.zeros((1, ct_p), jnp.float32).at[0, :target_size].set(
        jnp.asarray(b_i2o, jnp.float32))

    return dict(w_i2h_t=w1, b_i2h=b1, w_i2o_t=w2, b_i2o=b2,
                in_channels=in_channels, out_channels=out_channels,
                target_size=target_size, cin_p=cin_p, cout_p=cout_p, ct_p=ct_p)


def init_hiddens(batch_size, params, init_value=0.0):
    """init_hiddens(batch, init_value): zero (or init_value) eps0/eps1 state in
    the padded (batch, in_channels) layout the kernel consumes."""
    bp = _round_up(batch_size, SUBLANE)
    e = jnp.zeros((bp, params["cin_p"]), jnp.float32)
    e = e.at[:batch_size, :params["in_channels"]].set(init_value)
    return e, e


def _choose_block_batch(requested, batch_padded, cin_p, cout_p, ct_p,
                        budget_bytes=24 << 20):
    """Largest batch tile whose double-buffered streams fit the VMEM budget
    (budget sized against v7x's 32 MiB scoped VMEM, with headroom)."""
    per_row = 4 * (5 * cin_p + 3 * cout_p + ct_p)          # f32 tiled streams / row
    weights = 2 * 2 * (cin_p * cout_p + cout_p * ct_p)      # bf16, x2 buffers
    biases = 2 * 4 * (cout_p + ct_p)
    avail = max(budget_bytes - weights - biases, 2 * per_row * SUBLANE)
    tb = avail // (2 * per_row)                             # x2: double buffering
    tb = int(min(requested, batch_padded, tb))
    return max(SUBLANE, (tb // SUBLANE) * SUBLANE)


def dense_dcll_forward(x, eps0, eps1, params, *, block_batch=256):
    """One DenseDCLLlayer.forward step.

    x:          anything flattening to (batch, in_channels)  (mirrors .view(-1, C))
    eps0, eps1: padded recurrent state from init_hiddens / a previous step.
    params:     dict from prepare_params.

    Returns (spike, pvoutput, pv, pvmem, new_eps0, new_eps1); the first four are
    sliced back to caller-visible shapes, the state stays in the padded layout
    so it feeds straight into the next timestep (and is aliased in place).
    """
    cin, cout, ct = params["in_channels"], params["out_channels"], params["target_size"]
    cin_p, cout_p, ct_p = params["cin_p"], params["cout_p"], params["ct_p"]

    x2 = jnp.asarray(x, jnp.float32).reshape(-1, cin)
    batch = x2.shape[0]
    bp, state_cin = eps0.shape
    assert state_cin == cin_p and bp % SUBLANE == 0 and bp >= batch, (
        "state must come from init_hiddens(batch, params)")

    if x2.shape != (bp, cin_p):   # zero-pad input into the padded state layout
        x2 = jnp.zeros((bp, cin_p), jnp.float32).at[:batch, :cin].set(x2)

    tb = _choose_block_batch(block_batch, bp, cin_p, cout_p, ct_p)
    grid = (pl.cdiv(bp, tb),)

    row_in = pl.BlockSpec((tb, cin_p), lambda i: (i, 0))
    row_oc = pl.BlockSpec((tb, cout_p), lambda i: (i, 0))
    row_ot = pl.BlockSpec((tb, ct_p), lambda i: (i, 0))
    rep = lambda shape: pl.BlockSpec(shape, lambda i: (0, 0))   # replicated weights

    cost = pl.CostEstimate(
        flops=2 * bp * (cin_p * cout_p + cout_p * ct_p),
        transcendentals=bp * cout_p,                            # sigmoid
        bytes_accessed=(4 * bp * (5 * cin_p + 3 * cout_p + ct_p)
                        + 2 * (cin_p * cout_p + cout_p * ct_p)
                        + 4 * (cout_p + ct_p)),
    )

    outs = pl.pallas_call(
        dcll_dense_kernel,
        out_shape=(
            jax.ShapeDtypeStruct((bp, cout_p), jnp.float32),  # spike
            jax.ShapeDtypeStruct((bp, ct_p), jnp.float32),    # pvoutput
            jax.ShapeDtypeStruct((bp, cout_p), jnp.float32),  # pv
            jax.ShapeDtypeStruct((bp, cout_p), jnp.float32),  # pvmem
            jax.ShapeDtypeStruct((bp, cin_p), jnp.float32),   # new eps0
            jax.ShapeDtypeStruct((bp, cin_p), jnp.float32),   # new eps1
        ),
        grid=grid,
        in_specs=[row_in, row_in, row_in,
                  rep((cin_p, cout_p)), rep((1, cout_p)),
                  rep((cout_p, ct_p)), rep((1, ct_p))],
        out_specs=[row_oc, row_ot, row_oc, row_oc, row_in, row_in],
        # In-place recurrent state update: eps0 -> new_eps0, eps1 -> new_eps1.
        input_output_aliases={1: 4, 2: 5},
        compiler_params=pltpu.CompilerParams(
            dimension_semantics=("parallel",),        # v7x: 2 TCs split the batch
            vmem_limit_bytes=32 * 1024 * 1024),
        cost_estimate=cost,
    )(x2, eps0, eps1, params["w_i2h_t"], params["b_i2h"],
      params["w_i2o_t"], params["b_i2o"])

    spike, pvout, pv, vmem, eps0_new, eps1_new = outs
    return (spike[:batch, :cout], pvout[:batch, :ct], pv[:batch, :cout],
            vmem[:batch, :cout], eps0_new, eps1_new)


# ----------------------------------------------------------------------------
# Pure-JAX reference (mirrors the kernel's bf16 matmul operands exactly)
# ----------------------------------------------------------------------------
def reference_forward(x, eps0, eps1, w_i2h, b_i2h, w_i2o, b_i2o,
                      matmul_dtype=jnp.bfloat16):
    in_channels = w_i2h.shape[1]
    x2 = jnp.asarray(x, jnp.float32).reshape(-1, in_channels)
    e0 = x2 * TAU_S__DT + ALPHAS * eps0
    e1 = ALPHA * eps1 + e0 * TAU_M__DT
    vmem = jnp.dot(e1.astype(matmul_dtype), w_i2h.T.astype(matmul_dtype),
                   preferred_element_type=jnp.float32) + b_i2h
    pv = jax.nn.sigmoid(vmem)
    spike = (vmem > 0).astype(jnp.float32)
    pvout = jnp.dot(pv.astype(matmul_dtype), w_i2o.T.astype(matmul_dtype),
                    preferred_element_type=jnp.float32) + b_i2o
    return spike, pvout, pv, vmem, e0, e1


if __name__ == "__main__":
    # Small, deterministic setup consistent with the module's __init__.
    in_channels = 32
    out_channels = 64
    target_size = 16
    batch = 48

    key = jax.random.PRNGKey(0)
    k_x, k_w, k_b, k_w2, k_b2 = jax.random.split(key, 5)

    # i2h (CLLDenseModule.reset_parameters): stdv = 1/sqrt(in_channels)
    stdv = 1.0 / math.sqrt(in_channels)
    w_i2h = jax.random.uniform(k_w, (out_channels, in_channels), jnp.float32,
                               minval=-stdv * 0.01, maxval=stdv * 0.01)
    b_i2h = jax.random.uniform(k_b, (out_channels,), jnp.float32,
                               minval=-stdv, maxval=stdv)

    # i2o (reset_lc_parameters): stdv = lc_ampl / sqrt(out_channels), lc_ampl=0.5
    lc_ampl = 0.5
    stdv2 = lc_ampl / math.sqrt(out_channels)
    w_i2o = jax.random.uniform(k_w2, (target_size, out_channels), jnp.float32,
                               minval=-stdv2, maxval=stdv2)
    b_i2o = jax.random.uniform(k_b2, (target_size,), jnp.float32,
                               minval=-stdv2, maxval=stdv2)

    # One-time parameter prep (hoisted out of the timestep loop).
    params = prepare_params(w_i2h, b_i2h, w_i2o, b_i2o)

    # init_hiddens(batch, init_value=0)  -> padded state layout.
    eps0_p, eps1_p = init_hiddens(batch, params)

    # Synthetic spike-like input (Bernoulli 0/1), flattenable to (batch, in_channels).
    x = (jax.random.uniform(k_x, (batch, in_channels)) < 0.3).astype(jnp.float32)

    # Small block_batch so the demo actually exercises the batch grid (3 blocks).
    outs = dense_dcll_forward(x, eps0_p, eps1_p, params, block_batch=16)
    outs = jax.block_until_ready(outs)
    spike, pvout, pv, vmem, eps0_new, eps1_new = outs

    # Reference on the unpadded problem (zero initial state).
    e0_ref_in = jnp.zeros((batch, in_channels), jnp.float32)
    e1_ref_in = jnp.zeros((batch, in_channels), jnp.float32)
    r_spike, r_pvout, r_pv, r_vmem, r_e0, r_e1 = reference_forward(
        x, e0_ref_in, e1_ref_in, w_i2h, b_i2h, w_i2o, b_i2o)

    # Shapes / dtypes of the user-visible outputs.
    assert spike.shape == (batch, out_channels) and spike.dtype == jnp.float32
    assert pvout.shape == (batch, target_size) and pvout.dtype == jnp.float32
    assert pv.shape == (batch, out_channels) and vmem.shape == (batch, out_channels)
    assert eps0_new.shape == eps0_p.shape and eps1_new.shape == eps1_p.shape

    # Pure-f32 elementwise trace updates must match tightly.
    assert jnp.allclose(eps0_new[:batch, :in_channels], r_e0, atol=1e-5, rtol=1e-5)
    assert jnp.allclose(eps1_new[:batch, :in_channels], r_e1, atol=1e-5, rtol=1e-5)
    # Padded state columns stay identically zero.
    assert float(jnp.abs(eps0_new[:, in_channels:]).max()) == 0.0
    assert float(jnp.abs(eps1_new[:, in_channels:]).max()) == 0.0

    # bf16-MXU matmul outputs vs the bf16 reference.
    assert jnp.allclose(vmem, r_vmem, atol=1e-3, rtol=1e-3)
    assert jnp.allclose(pv, r_pv, atol=1e-3, rtol=1e-3)
    assert jnp.allclose(pvout, r_pvout, atol=1e-3, rtol=1e-3)

    # Spike is exactly the hard threshold of the kernel's own membrane potential.
    assert jnp.array_equal(spike, (vmem > 0).astype(jnp.float32))

    print("KERNEL_OK")
</pallas_src>

<mosaic_0001>
module attributes {stable_mosaic.version = 11 : i64} {
  func.func @dcll_dense_kernel(%arg0: i32, %arg1: memref<16x128xf32, #tpu.memory_space<vmem>>, %arg2: memref<16x128xf32, #tpu.memory_space<vmem>>, %arg3: memref<16x128xf32, #tpu.memory_space<vmem>>, %arg4: memref<128x128xbf16, #tpu.memory_space<vmem>>, %arg5: memref<1x128xf32, #tpu.memory_space<vmem>>, %arg6: memref<128x128xbf16, #tpu.memory_space<vmem>>, %arg7: memref<1x128xf32, #tpu.memory_space<vmem>>, %arg8: memref<16x128xf32, #tpu.memory_space<vmem>>, %arg9: memref<16x128xf32, #tpu.memory_space<vmem>>, %arg10: memref<16x128xf32, #tpu.memory_space<vmem>>, %arg11: memref<16x128xf32, #tpu.memory_space<vmem>>, %arg12: memref<16x128xf32, #tpu.memory_space<vmem>>, %arg13: memref<16x128xf32, #tpu.memory_space<vmem>>) attributes {dimension_semantics = [#tpu.dimension_semantics<parallel>], iteration_bounds = array<i64: 3>, scalar_prefetch = 0 : i64, scratch_operands = 0 : i64, tpu.core_type = #tpu.core_type<tc>, window_params = [{transform_indices = @transform_0, window_bounds = array<i64: 16, 128>}, {transform_indices = @transform_1, window_bounds = array<i64: 16, 128>}, {transform_indices = @transform_2, window_bounds = array<i64: 16, 128>}, {pipeline_mode = #tpu.pipeline_mode<synchronous>, transform_indices = @transform_3, window_bounds = array<i64: 128, 128>}, {pipeline_mode = #tpu.pipeline_mode<synchronous>, transform_indices = @transform_4, window_bounds = array<i64: 1, 128>}, {pipeline_mode = #tpu.pipeline_mode<synchronous>, transform_indices = @transform_5, window_bounds = array<i64: 128, 128>}, {pipeline_mode = #tpu.pipeline_mode<synchronous>, transform_indices = @transform_6, window_bounds = array<i64: 1, 128>}, {transform_indices = @transform_7, window_bounds = array<i64: 16, 128>}, {transform_indices = @transform_8, window_bounds = array<i64: 16, 128>}, {transform_indices = @transform_9, window_bounds = array<i64: 16, 128>}, {transform_indices = @transform_10, window_bounds = array<i64: 16, 128>}, {transform_indices = @transform_11, window_bounds = array<i64: 16, 128>}, {transform_indices = @transform_12, window_bounds = array<i64: 16, 128>}]} {
    %c0 = arith.constant 0 : index
    %c0_0 = arith.constant 0 : index
    %0 = vector.load %arg1[%c0, %c0_0] : memref<16x128xf32, #tpu.memory_space<vmem>>, vector<16x128xf32>
    %cst = arith.constant 6.66666651 : f32
    %1 = vector.broadcast %cst : f32 to vector<16x128xf32>
    %2 = arith.mulf %0, %1 : vector<16x128xf32>
    %c0_1 = arith.constant 0 : index
    %c0_2 = arith.constant 0 : index
    %3 = vector.load %arg2[%c0_1, %c0_2] : memref<16x128xf32, #tpu.memory_space<vmem>>, vector<16x128xf32>
    %cst_3 = arith.constant 8.500000e-01 : f32
    %4 = vector.broadcast %cst_3 : f32 to vector<16x128xf32>
    %5 = arith.mulf %4, %3 : vector<16x128xf32>
    %6 = arith.addf %2, %5 : vector<16x128xf32>
    %c0_4 = arith.constant 0 : index
    %c0_5 = arith.constant 0 : index
    %7 = vector.load %arg3[%c0_4, %c0_5] : memref<16x128xf32, #tpu.memory_space<vmem>>, vector<16x128xf32>
    %cst_6 = arith.constant 0.899999976 : f32
    %8 = vector.broadcast %cst_6 : f32 to vector<16x128xf32>
    %9 = arith.mulf %8, %7 : vector<16x128xf32>
    %cst_7 = arith.constant 1.000000e+01 : f32
    %10 = vector.broadcast %cst_7 : f32 to vector<16x128xf32>
    %11 = arith.mulf %6, %10 : vector<16x128xf32>
    %12 = arith.addf %9, %11 : vector<16x128xf32>
    %13 = arith.truncf %12 : vector<16x128xf32> to vector<16x128xbf16>
    %c0_8 = arith.constant 0 : index
    %c0_9 = arith.constant 0 : index
    %14 = vector.load %arg4[%c0_8, %c0_9] : memref<128x128xbf16, #tpu.memory_space<vmem>>, vector<128x128xbf16>
    %cst_10 = arith.constant dense<0.000000e+00> : vector<16x128xf32>
    %15 = tpu.matmul %13, %14, %cst_10 {dimension_numbers = #tpu.dot_dimension_numbers<[1], [0], [0], [1], [0, 0, 1, 1], [], []>} : vector<16x128xbf16>, vector<128x128xbf16>, vector<16x128xf32> -> vector<16x128xf32>
    %c0_11 = arith.constant 0 : index
    %c0_12 = arith.constant 0 : index
    %16 = vector.load %arg5[%c0_11, %c0_12] : memref<1x128xf32, #tpu.memory_space<vmem>>, vector<1x128xf32>
    %17 = vector.broadcast %16 : vector<1x128xf32> to vector<16x128xf32>
    %18 = arith.addf %15, %17 : vector<16x128xf32>
    %19 = arith.negf %18 : vector<16x128xf32>
    %20 = math.exp %19 : vector<16x128xf32>
    %cst_13 = arith.constant 1.000000e+00 : f32
    %21 = vector.broadcast %cst_13 : f32 to vector<16x128xf32>
    %22 = arith.addf %21, %20 : vector<16x128xf32>
    %23 = arith.divf %21, %22 : vector<16x128xf32>
    %24 = arith.truncf %23 : vector<16x128xf32> to vector<16x128xbf16>
    %c0_14 = arith.constant 0 : index
    %c0_15 = arith.constant 0 : index
    %25 = vector.load %arg6[%c0_14, %c0_15] : memref<128x128xbf16, #tpu.memory_space<vmem>>, vector<128x128xbf16>
    %cst_16 = arith.constant dense<0.000000e+00> : vector<16x128xf32>
    %26 = tpu.matmul %24, %25, %cst_16 {dimension_numbers = #tpu.dot_dimension_numbers<[1], [0], [0], [1], [0, 0, 1, 1], [], []>} : vector<16x128xbf16>, vector<128x128xbf16>, vector<16x128xf32> -> vector<16x128xf32>
    %c0_17 = arith.constant 0 : index
    %c0_18 = arith.constant 0 : index
    %27 = vector.load %arg7[%c0_17, %c0_18] : memref<1x128xf32, #tpu.memory_space<vmem>>, vector<1x128xf32>
    %28 = vector.broadcast %27 : vector<1x128xf32> to vector<16x128xf32>
    %29 = arith.addf %26, %28 : vector<16x128xf32>
    %cst_19 = arith.constant 0.000000e+00 : f32
    %30 = vector.broadcast %cst_19 : f32 to vector<16x128xf32>
    %31 = arith.cmpf ogt, %18, %30 : vector<16x128xf32>
    %32 = arith.extui %31 : vector<16x128xi1> to vector<16x128xi32>
    %33 = arith.sitofp %32 : vector<16x128xi32> to vector<16x128xf32>
    %c0_20 = arith.constant 0 : index
    %c0_21 = arith.constant 0 : index
    %34 = vector.load %arg8[%c0_20, %c0_21] : memref<16x128xf32, #tpu.memory_space<vmem>>, vector<16x128xf32>
    tpu.vector_store %arg8[%c0_20, %c0_21], %33 {strides = array<i32>} : memref<16x128xf32, #tpu.memory_space<vmem>>, vector<16x128xf32>,
    %c0_22 = arith.constant 0 : index
    %c0_23 = arith.constant 0 : index
    %35 = vector.load %arg9[%c0_22, %c0_23] : memref<16x128xf32, #tpu.memory_space<vmem>>, vector<16x128xf32>
    tpu.vector_store %arg9[%c0_22, %c0_23], %29 {strides = array<i32>} : memref<16x128xf32, #tpu.memory_space<vmem>>, vector<16x128xf32>,
    %c0_24 = arith.constant 0 : index
    %c0_25 = arith.constant 0 : index
    %36 = vector.load %arg10[%c0_24, %c0_25] : memref<16x128xf32, #tpu.memory_space<vmem>>, vector<16x128xf32>
    tpu.vector_store %arg10[%c0_24, %c0_25], %23 {strides = array<i32>} : memref<16x128xf32, #tpu.memory_space<vmem>>, vector<16x128xf32>,
    %c0_26 = arith.constant 0 : index
    %c0_27 = arith.constant 0 : index
    %37 = vector.load %arg11[%c0_26, %c0_27] : memref<16x128xf32, #tpu.memory_space<vmem>>, vector<16x128xf32>
    tpu.vector_store %arg11[%c0_26, %c0_27], %18 {strides = array<i32>} : memref<16x128xf32, #tpu.memory_space<vmem>>, vector<16x128xf32>,
    %c0_28 = arith.constant 0 : index
    %c0_29 = arith.constant 0 : index
    %38 = vector.load %arg12[%c0_28, %c0_29] : memref<16x128xf32, #tpu.memory_space<vmem>>, vector<16x128xf32>
    tpu.vector_store %arg12[%c0_28, %c0_29], %6 {strides = array<i32>} : memref<16x128xf32, #tpu.memory_space<vmem>>, vector<16x128xf32>,
    %c0_30 = arith.constant 0 : index
    %c0_31 = arith.constant 0 : index
    %39 = vector.load %arg13[%c0_30, %c0_31] : memref<16x128xf32, #tpu.memory_space<vmem>>, vector<16x128xf32>
    tpu.vector_store %arg13[%c0_30, %c0_31], %12 {strides = array<i32>} : memref<16x128xf32, #tpu.memory_space<vmem>>, vector<16x128xf32>,
    return
  }
  func.func @transform_0(%arg0: i32) -> (i32, i32) {
    %c0_i32 = arith.constant 0 : i32
    %c0_i32_0 = arith.constant 0 : i32
    return %arg0, %c0_i32 : i32, i32
  }
  func.func @transform_1(%arg0: i32) -> (i32, i32) {
    %c0_i32 = arith.constant 0 : i32
    %c0_i32_0 = arith.constant 0 : i32
    return %arg0, %c0_i32 : i32, i32
  }
  func.func @transform_2(%arg0: i32) -> (i32, i32) {
    %c0_i32 = arith.constant 0 : i32
    %c0_i32_0 = arith.constant 0 : i32
    return %arg0, %c0_i32 : i32, i32
  }
  func.func @transform_3(%arg0: i32) -> (i32, i32) {
    %c0_i32 = arith.constant 0 : i32
    %c0_i32_0 = arith.constant 0 : i32
    %c0_i32_1 = arith.constant 0 : i32
    return %c0_i32, %c0_i32_0 : i32, i32
  }
  func.func @transform_4(%arg0: i32) -> (i32, i32) {
    %c0_i32 = arith.constant 0 : i32
    %c0_i32_0 = arith.constant 0 : i32
    %c0_i32_1 = arith.constant 0 : i32
    return %c0_i32, %c0_i32_0 : i32, i32
  }
  func.func @transform_5(%arg0: i32) -> (i32, i32) {
    %c0_i32 = arith.constant 0 : i32
    %c0_i32_0 = arith.constant 0 : i32
    %c0_i32_1 = arith.constant 0 : i32
    return %c0_i32, %c0_i32_0 : i32, i32
  }
  func.func @transform_6(%arg0: i32) -> (i32, i32) {
    %c0_i32 = arith.constant 0 : i32
    %c0_i32_0 = arith.constant 0 : i32
    %c0_i32_1 = arith.constant 0 : i32
    return %c0_i32, %c0_i32_0 : i32, i32
  }
  func.func @transform_7(%arg0: i32) -> (i32, i32) {
    %c0_i32 = arith.constant 0 : i32
    %c0_i32_0 = arith.constant 0 : i32
    return %arg0, %c0_i32 : i32, i32
  }
  func.func @transform_8(%arg0: i32) -> (i32, i32) {
    %c0_i32 = arith.constant 0 : i32
    %c0_i32_0 = arith.constant 0 : i32
    return %arg0, %c0_i32 : i32, i32
  }
  func.func @transform_9(%arg0: i32) -> (i32, i32) {
    %c0_i32 = arith.constant 0 : i32
    %c0_i32_0 = arith.constant 0 : i32
    return %arg0, %c0_i32 : i32, i32
  }
  func.func @transform_10(%arg0: i32) -> (i32, i32) {
    %c0_i32 = arith.constant 0 : i32
    %c0_i32_0 = arith.constant 0 : i32
    return %arg0, %c0_i32 : i32, i32
  }
  func.func @transform_11(%arg0: i32) -> (i32, i32) {
    %c0_i32 = arith.constant 0 : i32
    %c0_i32_0 = arith.constant 0 : i32
    return %arg0, %c0_i32 : i32, i32
  }
  func.func @transform_12(%arg0: i32) -> (i32, i32) {
    %c0_i32 = arith.constant 0 : i32
    %c0_i32_0 = arith.constant 0 : i32
    return %arg0, %c0_i32 : i32, i32
  }
}

</mosaic_0001>

<llo_original>
// kernel: tpu_custom_call.1
$region0: #{tpu_custom_call.1}
  #allocation0 [shape = 'u32[]', space=smem, size = 0x4, offset = 0x4, fixed_abs, tag = 'smem constant byte address 0x4 - core index']
  #allocation1 [shape = 'u32[144,128]{1,0:T(1,128)}', space=vmem, size = 0x12000, scoped, tag = 'internal scratch']
  %s0 = inlined_call_operand.vmem [shape: f32[48,128], index: 0, kind: input, shape index: {}]
  %s1 = inlined_call_operand.hbm [shape: f32[48,128], index: 1, kind: input, shape index: {}, may-alias: {1,11}]
  %s2 = inlined_call_operand.hbm [shape: f32[48,128], index: 2, kind: input, shape index: {}, may-alias: {2,12}]
  %s3 = inlined_call_operand.vmem [shape: bf16[128,128], index: 3, kind: input, shape index: {}]
  %s4 = inlined_call_operand.vmem [shape: f32[1,128], index: 4, kind: input, shape index: {}]
  %s5 = inlined_call_operand.vmem [shape: bf16[128,128], index: 5, kind: input, shape index: {}]
  %s6 = inlined_call_operand.vmem [shape: f32[1,128], index: 6, kind: input, shape index: {}]
  %s7 = inlined_call_operand.hbm [shape: f32[48,128], index: 7, kind: output, shape index: {0}]
  %s8 = inlined_call_operand.hbm [shape: f32[48,128], index: 8, kind: output, shape index: {1}]
  %s9 = inlined_call_operand.hbm [shape: f32[48,128], index: 9, kind: output, shape index: {2}]
  %s10 = inlined_call_operand.hbm [shape: f32[48,128], index: 10, kind: output, shape index: {3}]
  %s11 = inlined_call_operand.hbm [shape: f32[48,128], index: 11, kind: output, shape index: {4}, may-alias: {1,11}]
  %s12 = inlined_call_operand.hbm [shape: f32[48,128], index: 12, kind: output, shape index: {5}, may-alias: {2,12}]
  %13 = xla_tuple %s7, %s8, %s9, %s10, %s11, %s12
  %s14 = sld [smem:[#allocation0]]
  $region109: #{tpu_custom_call.1} parent=0
    _
  %s16 = ssub.s32 1, %s14
  %s17 = scalar_select 0, %s16, %s14
  $region1: #{tpu_custom_call.1} parent=0
    #allocation2 [shape = 'u8[16384]{0}', space=vmem, size = 0x4000, scoped, tag = 'input window, operand 1']
    #allocation3 [shape = 's32[2]{0}', space=sflag, size = 0x8, scoped, tag = 'scoped memory for tpu_custom_call.1']
    #allocation4 [shape = 's32[2]{0}', space=sflag, size = 0x8, scoped, tag = 'scoped memory for tpu_custom_call.1']
    #allocation5 [shape = 'u8[16384]{0}', space=vmem, size = 0x4000, scoped, tag = 'input window, operand 2']
    #allocation6 [shape = 's32[2]{0}', space=sflag, size = 0x8, scoped, tag = 'scoped memory for tpu_custom_call.1']
    #allocation7 [shape = 'u8[16384]{0}', space=vmem, size = 0x4000, scoped, tag = 'output window, operand 0']
    #allocation8 [shape = 'u8[16384]{0}', space=vmem, size = 0x4000, scoped, tag = 'output window, operand 1']
    #allocation9 [shape = 's32[2]{0}', space=sflag, size = 0x8, scoped, tag = 'scoped memory for tpu_custom_call.1']
    #allocation10 [shape = 'u8[16384]{0}', space=vmem, size = 0x4000, scoped, tag = 'output window, operand 2']
    #allocation11 [shape = 'u8[16384]{0}', space=vmem, size = 0x4000, scoped, tag = 'output window, operand 3']
    #allocation12 [shape = 's32[2]{0}', space=sflag, size = 0x8, scoped, tag = 'scoped memory for tpu_custom_call.1']
    #allocation13 [shape = 'u8[16384]{0}', space=vmem, size = 0x4000, scoped, tag = 'output window, operand 4']
    #allocation14 [shape = 'u8[16384]{0}', space=vmem, size = 0x4000, scoped, tag = 'output window, operand 5']
    #allocation15 [shape = 's32[2]{0}', space=sflag, size = 0x8, scoped, tag = 'scoped memory for tpu_custom_call.1']
    %18 = vsyncpa [#allocation3], 0
    %s19 = scalar_lea.sflag [#allocation3], 1
    %20 = vsyncpa %s19, 0
    %21 = vsyncpa [#allocation6], 0
    %s22 = scalar_lea.sflag [#allocation6], 1
    %23 = vsyncpa %s22, 0
    %24 = vsyncpa [#allocation4], 0
    %s25 = scalar_lea.sflag [#allocation4], 1
    %26 = vsyncpa %s25, 0
    %27 = vsyncpa [#allocation9], 0
    %s28 = scalar_lea.sflag [#allocation9], 1
    %29 = vsyncpa %s28, 0
    %30 = vsyncpa [#allocation12], 0
    %s31 = scalar_lea.sflag [#allocation12], 1
    %32 = vsyncpa %s31, 0
    %33 = vsyncpa [#allocation15], 0
    %s34 = scalar_lea.sflag [#allocation15], 1
    %35 = vsyncpa %s34, 0
    loop: start=0, step=1, limit=5
    $region2: #{tpu_custom_call.1} parent=1 // loop_pre_header
      _
    $region3: #{tpu_custom_call.1} parent=1 // loop_header
      %s37 = sphi 0, %s41
      %p38 = scmp.ge.s32.totalorder %s37, 5
      %s47 = sphi 0, %s49
      %s50 = sphi 0, %s47
      %s51 = sphi 0, %s50
      %s67 = sphi 0, %s51
      %s73 = sphi 0, %s75
      %s76 = sphi 0, %s73
      %s77 = sphi 0, %s76
      %s93 = sphi 0, %s77
      %s99 = sphi 0, %s101
      %s102 = sphi 0, %s99
      %s103 = sphi 0, %s102
      %s119 = sphi 0, %s103
      %s123 = sphi 0, %s123
      %s125 = sphi 0, %s123
      %s126 = sphi 0, %s125
      %s140 = sphi 0, %s126
      %s144 = sphi 0, %s144
      %s146 = sphi 0, %s144
      %s147 = sphi 0, %s146
      %s161 = sphi 0, %s147
      %s165 = sphi 0, %s165
      %s167 = sphi 0, %s165
      %s168 = sphi 0, %s167
      %s182 = sphi 0, %s168
      %s186 = sphi 0, %s186
      %s188 = sphi 0, %s186
      %s189 = sphi 0, %s188
      %s203 = sphi 0, %s189
      %s209 = sphi 0, %s211
      %s212 = sphi 0, %s209
      %s213 = sphi 0, %s212
      %s229 = sphi 0, %s213
      %s235 = sphi 0, %s237
      %s238 = sphi 0, %s235
      %s239 = sphi 0, %s238
      %s255 = sphi 0, %s239
      %s261 = sphi 0, %s263
      %s264 = sphi 0, %s261
      %s265 = sphi 0, %s264
      %s281 = sphi 0, %s265
      %s287 = sphi 0, %s289
      %s290 = sphi 0, %s287
      %s291 = sphi 0, %s290
      %s307 = sphi 0, %s291
      %s313 = sphi 0, %s315
      %s316 = sphi 0, %s313
      %s317 = sphi 0, %s316
      %s333 = sphi 0, %s317
      %s339 = sphi 0, %s341
      %s342 = sphi 0, %s339
      %s343 = sphi 0, %s342
      %s359 = sphi 0, %s343
    $region4: #{tpu_custom_call.1} parent=1 // loop_header_branch
      %40 = sbr.rel (%p38) target = $region8
    $region5: #{tpu_custom_call.1} parent=1 // loop_body
      %s42 = ssub.s32 %s37, 1
      %s43 = ssub.s32 %s37, 2
      %s44 = sadd.s32 %s37, 1
      %s45 = ssub.s32 %s37, %s44
      %p46 = scmp.eq.s32.totalorder %s45, 0
      %s48 = sadd.s32 %s47, 1
      %s49 = scalar_select %p46, %s47, %s48
      %p52 = pneg %p46
      %p53 = scmp.eq.s32.totalorder %s37, 2
      %p54 = por %p52, %p53
      %p55 = scmp.ne.s32.totalorder %s47, %s50
      %p56 = scmp.eq.s32.totalorder %s37, 0
      %p57 = por %p55, %p56
      %p58 = scmp.ne.s32.totalorder %s47, %s50
      %p59 = scmp.eq.s32.totalorder %s42, 2
      %p60 = por %p58, %p59
      %p61 = scmp.ne.s32.totalorder %s50, %s51
      %p62 = scmp.eq.s32.totalorder %s42, 0
      %p63 = por %p61, %p62
      %p64 = scmp.ne.s32.totalorder %s50, %s51
      %p65 = scmp.eq.s32.totalorder %s43, 2
      %p66 = por %p64, %p65
      %p68 = scmp.ne.s32.totalorder %s51, %s67
      %p69 = scmp.eq.s32.totalorder %s43, 0
      %p70 = por %p68, %p69
      %s71 = ssub.s32 %s37, %s44
      %p72 = scmp.eq.s32.totalorder %s71, 0
      %s74 = sadd.s32 %s73, 1
      %s75 = scalar_select %p72, %s73, %s74
      %p78 = pneg %p72
      %p79 = scmp.eq.s32.totalorder %s37, 2
      %p80 = por %p78, %p79
      %p81 = scmp.ne.s32.totalorder %s73, %s76
      %p82 = scmp.eq.s32.totalorder %s37, 0
      %p83 = por %p81, %p82
      %p84 = scmp.ne.s32.totalorder %s73, %s76
      %p85 = scmp.eq.s32.totalorder %s42, 2
      %p86 = por %p84, %p85
      %p87 = scmp.ne.s32.totalorder %s76, %s77
      %p88 = scmp.eq.s32.totalorder %s42, 0
      %p89 = por %p87, %p88
      %p90 = scmp.ne.s32.totalorder %s76, %s77
      %p91 = scmp.eq.s32.totalorder %s43, 2
      %p92 = por %p90, %p91
      %p94 = scmp.ne.s32.totalorder %s77, %s93
      %p95 = scmp.eq.s32.totalorder %s43, 0
      %p96 = por %p94, %p95
      %s97 = ssub.s32 %s37, %s44
      %p98 = scmp.eq.s32.totalorder %s97, 0
      %s100 = sadd.s32 %s99, 1
      %s101 = scalar_select %p98, %s99, %s100
      %p104 = pneg %p98
      %p105 = scmp.eq.s32.totalorder %s37, 2
      %p106 = por %p104, %p105
      %p107 = scmp.ne.s32.totalorder %s99, %s102
      %p108 = scmp.eq.s32.totalorder %s37, 0
      %p109 = por %p107, %p108
      %p110 = scmp.ne.s32.totalorder %s99, %s102
      %p111 = scmp.eq.s32.totalorder %s42, 2
      %p112 = por %p110, %p111
      %p113 = scmp.ne.s32.totalorder %s102, %s103
      %p114 = scmp.eq.s32.totalorder %s42, 0
      %p115 = por %p113, %p114
      %p116 = scmp.ne.s32.totalorder %s102, %s103
      %p117 = scmp.eq.s32.totalorder %s43, 2
      %p118 = por %p116, %p117
      %p120 = scmp.ne.s32.totalorder %s103, %s119
      %p121 = scmp.eq.s32.totalorder %s43, 0
      %p122 = por %p120, %p121
      %s124 = sadd.s32 %s123, 1
      %p127 = scmp.eq.s32.totalorder %s37, 2
      %p128 = scmp.ne.s32.totalorder %s123, %s125
      %p129 = scmp.eq.s32.totalorder %s37, 0
      %p130 = por %p128, %p129
      %p131 = scmp.ne.s32.totalorder %s123, %s125
      %p132 = scmp.eq.s32.totalorder %s42, 2
      %p133 = por %p131, %p132
      %p134 = scmp.ne.s32.totalorder %s125, %s126
      %p135 = scmp.eq.s32.totalorder %s42, 0
      %p136 = por %p134, %p135
      %p137 = scmp.ne.s32.totalorder %s125, %s126
      %p138 = scmp.eq.s32.totalorder %s43, 2
      %p139 = por %p137, %p138
      %p141 = scmp.ne.s32.totalorder %s126, %s140
      %p142 = scmp.eq.s32.totalorder %s43, 0
      %p143 = por %p141, %p142
      %s145 = sadd.s32 %s144, 1
      %p148 = scmp.eq.s32.totalorder %s37, 2
      %p149 = scmp.ne.s32.totalorder %s144, %s146
      %p150 = scmp.eq.s32.totalorder %s37, 0
      %p151 = por %p149, %p150
      %p152 = scmp.ne.s32.totalorder %s144, %s146
      %p153 = scmp.eq.s32.totalorder %s42, 2
      %p154 = por %p152, %p153
      %p155 = scmp.ne.s32.totalorder %s146, %s147
      %p156 = scmp.eq.s32.totalorder %s42, 0
      %p157 = por %p155, %p156
      %p158 = scmp.ne.s32.totalorder %s146, %s147
      %p159 = scmp.eq.s32.totalorder %s43, 2
      %p160 = por %p158, %p159
      %p162 = scmp.ne.s32.totalorder %s147, %s161
      %p163 = scmp.eq.s32.totalorder %s43, 0
      %p164 = por %p162, %p163
      %s166 = sadd.s32 %s165, 1
      %p169 = scmp.eq.s32.totalorder %s37, 2
      %p170 = scmp.ne.s32.totalorder %s165, %s167
      %p171 = scmp.eq.s32.totalorder %s37, 0
      %p172 = por %p170, %p171
      %p173 = scmp.ne.s32.totalorder %s165, %s167
      %p174 = scmp.eq.s32.totalorder %s42, 2
      %p175 = por %p173, %p174
      %p176 = scmp.ne.s32.totalorder %s167, %s168
      %p177 = scmp.eq.s32.totalorder %s42, 0
      %p178 = por %p176, %p177
      %p179 = scmp.ne.s32.totalorder %s167, %s168
      %p180 = scmp.eq.s32.totalorder %s43, 2
      %p181 = por %p179, %p180
      %p183 = scmp.ne.s32.totalorder %s168, %s182
      %p184 = scmp.eq.s32.totalorder %s43, 0
      %p185 = por %p183, %p184
      %s187 = sadd.s32 %s186, 1
      %p190 = scmp.eq.s32.totalorder %s37, 2
      %p191 = scmp.ne.s32.totalorder %s186, %s188
      %p192 = scmp.eq.s32.totalorder %s37, 0
      %p193 = por %p191, %p192
      %p194 = scmp.ne.s32.totalorder %s186, %s188
      %p195 = scmp.eq.s32.totalorder %s42, 2
      %p196 = por %p194, %p195
      %p197 = scmp.ne.s32.totalorder %s188, %s189
      %p198 = scmp.eq.s32.totalorder %s42, 0
      %p199 = por %p197, %p198
      %p200 = scmp.ne.s32.totalorder %s188, %s189
      %p201 = scmp.eq.s32.totalorder %s43, 2
      %p202 = por %p200, %p201
      %p204 = scmp.ne.s32.totalorder %s189, %s203
      %p205 = scmp.eq.s32.totalorder %s43, 0
      %p206 = por %p204, %p205
      %s207 = ssub.s32 %s37, %s44
      %p208 = scmp.eq.s32.totalorder %s207, 0
      %s210 = sadd.s32 %s209, 1
      %s211 = scalar_select %p208, %s209, %s210
      %p214 = pneg %p208
      %p215 = scmp.eq.s32.totalorder %s37, 2
      %p216 = por %p214, %p215
      %p217 = scmp.ne.s32.totalorder %s209, %s212
      %p218 = scmp.eq.s32.totalorder %s37, 0
      %p219 = por %p217, %p218
      %p220 = scmp.ne.s32.totalorder %s209, %s212
      %p221 = scmp.eq.s32.totalorder %s42, 2
      %p222 = por %p220, %p221
      %p223 = scmp.ne.s32.totalorder %s212, %s213
      %p224 = scmp.eq.s32.totalorder %s42, 0
      %p225 = por %p223, %p224
      %p226 = scmp.ne.s32.totalorder %s212, %s213
      %p227 = scmp.eq.s32.totalorder %s43, 2
      %p228 = por %p226, %p227
      %p230 = scmp.ne.s32.totalorder %s213, %s229
      %p231 = scmp.eq.s32.totalorder %s43, 0
      %p232 = por %p230, %p231
      %s233 = ssub.s32 %s37, %s44
      %p234 = scmp.eq.s32.totalorder %s233, 0
      %s236 = sadd.s32 %s235, 1
      %s237 = scalar_select %p234, %s235, %s236
      %p240 = pneg %p234
      %p241 = scmp.eq.s32.totalorder %s37, 2
      %p242 = por %p240, %p241
      %p243 = scmp.ne.s32.totalorder %s235, %s238
      %p244 = scmp.eq.s32.totalorder %s37, 0
      %p245 = por %p243, %p244
      %p246 = scmp.ne.s32.totalorder %s235, %s238
      %p247 = scmp.eq.s32.totalorder %s42, 2
      %p248 = por %p246, %p247
      %p249 = scmp.ne.s32.totalorder %s238, %s239
      %p250 = scmp.eq.s32.totalorder %s42, 0
      %p251 = por %p249, %p250
      %p252 = scmp.ne.s32.totalorder %s238, %s239
      %p253 = scmp.eq.s32.totalorder %s43, 2
      %p254 = por %p252, %p253
      %p256 = scmp.ne.s32.totalorder %s239, %s255
      %p257 = scmp.eq.s32.totalorder %s43, 0
      %p258 = por %p256, %p257
      %s259 = ssub.s32 %s37, %s44
      %p260 = scmp.eq.s32.totalorder %s259, 0
      %s262 = sadd.s32 %s261, 1
      %s263 = scalar_select %p260, %s261, %s262
      %p266 = pneg %p260
      %p267 = scmp.eq.s32.totalorder %s37, 2
      %p268 = por %p266, %p267
      %p269 = scmp.ne.s32.totalorder %s261, %s264
      %p270 = scmp.eq.s32.totalorder %s37, 0
      %p271 = por %p269, %p270
      %p272 = scmp.ne.s32.totalorder %s261, %s264
      %p273 = scmp.eq.s32.totalorder %s42, 2
      %p274 = por %p272, %p273
      %p275 = scmp.ne.s32.totalorder %s264, %s265
      %p276 = scmp.eq.s32.totalorder %s42, 0
      %p277 = por %p275, %p276
      %p278 = scmp.ne.s32.totalorder %s264, %s265
      %p279 = scmp.eq.s32.totalorder %s43, 2
      %p280 = por %p278, %p279
      %p282 = scmp.ne.s32.totalorder %s265, %s281
      %p283 = scmp.eq.s32.totalorder %s43, 0
      %p284 = por %p282, %p283
      %s285 = ssub.s32 %s37, %s44
      %p286 = scmp.eq.s32.totalorder %s285, 0
      %s288 = sadd.s32 %s287, 1
      %s289 = scalar_select %p286, %s287, %s288
      %p292 = pneg %p286
      %p293 = scmp.eq.s32.totalorder %s37, 2
      %p294 = por %p292, %p293
      %p295 = scmp.ne.s32.totalorder %s287, %s290
      %p296 = scmp.eq.s32.totalorder %s37, 0
      %p297 = por %p295, %p296
      %p298 = scmp.ne.s32.totalorder %s287, %s290
      %p299 = scmp.eq.s32.totalorder %s42, 2
      %p300 = por %p298, %p299
      %p301 = scmp.ne.s32.totalorder %s290, %s291
      %p302 = scmp.eq.s32.totalorder %s42, 0
      %p303 = por %p301, %p302
      %p304 = scmp.ne.s32.totalorder %s290, %s291
      %p305 = scmp.eq.s32.totalorder %s43, 2
      %p306 = por %p304, %p305
      %p308 = scmp.ne.s32.totalorder %s291, %s307
      %p309 = scmp.eq.s32.totalorder %s43, 0
      %p310 = por %p308, %p309
      %s311 = ssub.s32 %s37, %s44
      %p312 = scmp.eq.s32.totalorder %s311, 0
      %s314 = sadd.s32 %s313, 1
      %s315 = scalar_select %p312, %s313, %s314
      %p318 = pneg %p312
      %p319 = scmp.eq.s32.totalorder %s37, 2
      %p320 = por %p318, %p319
      %p321 = scmp.ne.s32.totalorder %s313, %s316
      %p322 = scmp.eq.s32.totalorder %s37, 0
      %p323 = por %p321, %p322
      %p324 = scmp.ne.s32.totalorder %s313, %s316
      %p325 = scmp.eq.s32.totalorder %s42, 2
      %p326 = por %p324, %p325
      %p327 = scmp.ne.s32.totalorder %s316, %s317
      %p328 = scmp.eq.s32.totalorder %s42, 0
      %p329 = por %p327, %p328
      %p330 = scmp.ne.s32.totalorder %s316, %s317
      %p331 = scmp.eq.s32.totalorder %s43, 2
      %p332 = por %p330, %p331
      %p334 = scmp.ne.s32.totalorder %s317, %s333
      %p335 = scmp.eq.s32.totalorder %s43, 0
      %p336 = por %p334, %p335
      %s337 = ssub.s32 %s37, %s44
      %p338 = scmp.eq.s32.totalorder %s337, 0
      %s340 = sadd.s32 %s339, 1
      %s341 = scalar_select %p338, %s339, %s340
      %p344 = pneg %p338
      %p345 = scmp.eq.s32.totalorder %s37, 2
      %p346 = por %p344, %p345
      %p347 = scmp.ne.s32.totalorder %s339, %s342
      %p348 = scmp.eq.s32.totalorder %s37, 0
      %p349 = por %p347, %p348
      %p350 = scmp.ne.s32.totalorder %s339, %s342
      %p351 = scmp.eq.s32.totalorder %s42, 2
      %p352 = por %p350, %p351
      %p353 = scmp.ne.s32.totalorder %s342, %s343
      %p354 = scmp.eq.s32.totalorder %s42, 0
      %p355 = por %p353, %p354
      %p356 = scmp.ne.s32.totalorder %s342, %s343
      %p357 = scmp.eq.s32.totalorder %s43, 2
      %p358 = por %p356, %p357
      %p360 = scmp.ne.s32.totalorder %s343, %s359
      %p361 = scmp.eq.s32.totalorder %s43, 0
      %p362 = por %p360, %p361
      %p363 = scmp.le.s32.totalorder 1, %s37
      %p364 = scmp.lt.s32.totalorder %s37, 4
      %p365 = pnand %p363, %p364
      %p366 = pneg %p365
      // Predicated region
      $region9: #{tpu_custom_call.1} parent=5 // pred_check
        _
      $region10: #{tpu_custom_call.1} parent=5 // pred_check_branch
        %368 = sbr.rel (%p365) target = $region12
      $region11: #{tpu_custom_call.1} parent=5 // pred_region
        %s369 = ssub.s32 %s37, 1
        // Predicated region
        $region13: #{tpu_custom_call.1} parent=11 // pred_check
          %p370 = pneg %p136
        $region14: #{tpu_custom_call.1} parent=11 // pred_check_branch
          %372 = sbr.rel (%p370) target = $region16
        $region15: #{tpu_custom_call.1} parent=11 // pred_region
          _
        $region16: #{tpu_custom_call.1} parent=11 // pred_fallthru
          _
        // Predicated region
        $region17: #{tpu_custom_call.1} parent=11 // pred_check
          %p373 = pneg %p157
        $region18: #{tpu_custom_call.1} parent=11 // pred_check_branch
          %375 = sbr.rel (%p373) target = $region20
        $region19: #{tpu_custom_call.1} parent=11 // pred_region
          _
        $region20: #{tpu_custom_call.1} parent=11 // pred_fallthru
          _
        // Predicated region
        $region21: #{tpu_custom_call.1} parent=11 // pred_check
          %p376 = pneg %p178
        $region22: #{tpu_custom_call.1} parent=11 // pred_check_branch
          %378 = sbr.rel (%p376) target = $region24
        $region23: #{tpu_custom_call.1} parent=11 // pred_region
          _
        $region24: #{tpu_custom_call.1} parent=11 // pred_fallthru
          _
        // Predicated region
        $region25: #{tpu_custom_call.1} parent=11 // pred_check
          %p379 = pneg %p199
        $region26: #{tpu_custom_call.1} parent=11 // pred_check_branch
          %381 = sbr.rel (%p379) target = $region28
        $region27: #{tpu_custom_call.1} parent=11 // pred_region
          _
        $region28: #{tpu_custom_call.1} parent=11 // pred_fallthru
          _
      $region12: #{tpu_custom_call.1} parent=5 // pred_fallthru
        _
      %p382 = scmp.lt.s32.totalorder %s37, 3
      // Predicated region
      $region29: #{tpu_custom_call.1} parent=5 // pred_check
        %p383 = pneg %p382
      $region30: #{tpu_custom_call.1} parent=5 // pred_check_branch
        %385 = sbr.rel (%p383) target = $region32
      $region31: #{tpu_custom_call.1} parent=5 // pred_region
        // Predicated region
        $region33: #{tpu_custom_call.1} parent=31 // pred_check
          %p386 = pneg %p57
        $region34: #{tpu_custom_call.1} parent=31 // pred_check_branch
          %388 = sbr.rel (%p386) target = $region36
        $region35: #{tpu_custom_call.1} parent=31 // pred_region
          %s389 = smul.u32 2, %s37
          %p390 = scmp.lt.s32.totalorder %s389, 5
          %s391 = scalar_select %p390, %s389, 5
          %s392 = smul.addr %s391, 8
          %s393 = scalar_lea.vmem %s0, %s392
          %s394 = smul.u32 2, %s37
        $region36: #{tpu_custom_call.1} parent=31 // pred_fallthru
          _
        // Predicated region
        $region37: #{tpu_custom_call.1} parent=31 // pred_check
          %p395 = pneg %p83
        $region38: #{tpu_custom_call.1} parent=31 // pred_check_branch
          %397 = sbr.rel (%p395) target = $region40
        $region39: #{tpu_custom_call.1} parent=31 // pred_region
          %s398 = sand.u32 %s73, 1
          %s399 = scalar_lea.sflag [#allocation3], %s398
          %s400 = sand.u32 %s73, 1
          %s401 = smul.addr %s400, 16
          %s402 = scalar_lea.vmem [#allocation2], %s401
          %s403 = smul.u32 2, %s37
          %s405 = ssub.s32 256, 256
          %406 = vsyncadd %s399, %s405
          %s407 = smul.addr %s403, 128
          %s408 = scalar_lea.hbm %s1, %s407
          %s409 = sshll.u32 %s402, 4
          %s410 = int_to_ptr.vmem [resolvable:$true] %s409
          %415 = dma.hbm_to_vmem [thread:$0]  %s408, 256, %s410, %s399, 128, 128, 8
        $region40: #{tpu_custom_call.1} parent=31 // pred_fallthru
          _
        // Predicated region
        $region41: #{tpu_custom_call.1} parent=31 // pred_check
          %p416 = pneg %p109
        $region42: #{tpu_custom_call.1} parent=31 // pred_check_branch
          %418 = sbr.rel (%p416) target = $region44
        $region43: #{tpu_custom_call.1} parent=31 // pred_region
          %s419 = sand.u32 %s99, 1
          %s420 = scalar_lea.sflag [#allocation6], %s419
          %s421 = sand.u32 %s99, 1
          %s422 = smul.addr %s421, 16
          %s423 = scalar_lea.vmem [#allocation5], %s422
          %s424 = smul.u32 2, %s37
          %s426 = ssub.s32 256, 256
          %427 = vsyncadd %s420, %s426
          %s428 = smul.addr %s424, 128
          %s429 = scalar_lea.hbm %s2, %s428
          %s430 = sshll.u32 %s423, 4
          %s431 = int_to_ptr.vmem [resolvable:$true] %s430
          %436 = dma.hbm_to_vmem [thread:$0]  %s429, 256, %s431, %s420, 128, 128, 8
        $region44: #{tpu_custom_call.1} parent=31 // pred_fallthru
          _
      $region32: #{tpu_custom_call.1} parent=5 // pred_fallthru
        _
      %p437 = scmp.le.s32.totalorder 1, %s37
      %p438 = scmp.lt.s32.totalorder %s37, 4
      %p439 = pnand %p437, %p438
      %p440 = pneg %p439
      // Predicated region
      $region45: #{tpu_custom_call.1} parent=5 // pred_check
        _
      $region46: #{tpu_custom_call.1} parent=5 // pred_check_branch
        %442 = sbr.rel (%p439) target = $region48
      $region47: #{tpu_custom_call.1} parent=5 // pred_region
        %s443 = ssub.s32 %s37, 1
        %s444 = sand.u32 %s76, 1
        %s445 = scalar_lea.sflag [#allocation3], %s444
        %s446 = sand.u32 %s76, 1
        %s447 = smul.addr %s446, 16
        %s448 = scalar_lea.vmem [#allocation2], %s447
        // Predicated region
        $region49: #{tpu_custom_call.1} parent=47 // pred_check
          %p449 = pneg %p89
        $region50: #{tpu_custom_call.1} parent=47 // pred_check_branch
          %451 = sbr.rel (%p449) target = $region52
        $region51: #{tpu_custom_call.1} parent=47 // pred_region
          %452 = dma.done %s445, 256
        $region52: #{tpu_custom_call.1} parent=47 // pred_fallthru
          _
        %s453 = sand.u32 %s102, 1
        %s454 = scalar_lea.sflag [#allocation6], %s453
        %s455 = sand.u32 %s102, 1
        %s456 = smul.addr %s455, 16
        %s457 = scalar_lea.vmem [#allocation5], %s456
        // Predicated region
        $region53: #{tpu_custom_call.1} parent=47 // pred_check
          %p458 = pneg %p115
        $region54: #{tpu_custom_call.1} parent=47 // pred_check_branch
          %460 = sbr.rel (%p458) target = $region56
        $region55: #{tpu_custom_call.1} parent=47 // pred_region
          %461 = dma.done %s454, 256
        $region56: #{tpu_custom_call.1} parent=47 // pred_fallthru
          _
        %s462 = smul.u32 2, %s42
        %p463 = scmp.lt.s32.totalorder %s462, 5
        %s464 = scalar_select %p463, %s462, 5
        %s465 = smul.addr %s464, 8
        %s466 = scalar_lea.vmem %s0, %s465
        %p467 = pneg %p63
        %p468 = pneg %p60
        %s469 = sand.u32 %s76, 1
        %s470 = scalar_lea.sflag [#allocation3], %s469
        %s471 = sand.u32 %s76, 1
        %s472 = smul.addr %s471, 16
        %s473 = scalar_lea.vmem [#allocation2], %s472
        %p474 = pneg %p89
        %p475 = pneg %p86
        %s476 = sand.u32 %s102, 1
        %s477 = scalar_lea.sflag [#allocation6], %s476
        %s478 = sand.u32 %s102, 1
        %s479 = smul.addr %s478, 16
        %s480 = scalar_lea.vmem [#allocation5], %s479
        %p481 = pneg %p115
        %p482 = pneg %p112
        %p483 = pneg %p136
        %p484 = pneg %p133
        %p485 = pneg %p157
        %p486 = pneg %p154
        %p487 = pneg %p178
        %p488 = pneg %p175
        %p489 = pneg %p199
        %p490 = pneg %p196
        %p491 = pneg %p225
        %p492 = pneg %p222
        %s493 = sand.u32 %s212, 1
        %s494 = scalar_lea.sflag [#allocation4], %s493
        %s495 = sand.u32 %s212, 1
        %s496 = smul.addr %s495, 16
        %s497 = scalar_lea.vmem [#allocation7], %s496
        %p498 = pneg %p251
        %p499 = pneg %p248
        %s500 = sand.u32 %s42, 1
        %s501 = scalar_lea.sflag [#allocation9], %s500
        %s502 = sand.u32 %s238, 1
        %s503 = smul.addr %s502, 16
        %s504 = scalar_lea.vmem [#allocation8], %s503
        %p505 = pneg %p277
        %p506 = pneg %p274
        %s507 = sand.u32 %s42, 1
        %s508 = scalar_lea.sflag [#allocation9], %s507
        %s509 = sand.u32 %s264, 1
        %s510 = smul.addr %s509, 16
        %s511 = scalar_lea.vmem [#allocation10], %s510
        %p512 = pneg %p303
        %p513 = pneg %p300
        %s514 = sand.u32 %s42, 1
        %s515 = scalar_lea.sflag [#allocation12], %s514
        %s516 = sand.u32 %s290, 1
        %s517 = smul.addr %s516, 16
        %s518 = scalar_lea.vmem [#allocation11], %s517
        %p519 = pneg %p329
        %p520 = pneg %p326
        %s521 = sand.u32 %s42, 1
        %s522 = scalar_lea.sflag [#allocation12], %s521
        %s523 = sand.u32 %s316, 1
        %s524 = smul.addr %s523, 16
        %s525 = scalar_lea.vmem [#allocation13], %s524
        %p526 = pneg %p355
        %p527 = pneg %p352
        %s528 = sand.u32 %s342, 1
        %s529 = scalar_lea.sflag [#allocation15], %s528
        %s530 = sand.u32 %s342, 1
        %s531 = smul.addr %s530, 16
        %s532 = scalar_lea.vmem [#allocation14], %s531
        %s533 = smul.u32 2, %s42
        %p534 = scmp.lt.s32.totalorder %s533, 5
        %s535 = scalar_select %p534, %s533, 5
        %s536 = smul.addr %s535, 8
        %s537 = scalar_lea.vmem %s0, %s536
        %s538 = smul.u32 2, %s42
        %s539 = smul.u32 2, %s42
        %s540 = smul.u32 2, %s42
        %s541 = smul.u32 2, %s42
        %s542 = smul.u32 2, %s42
        %s543 = smul.u32 2, %s42
        %s544 = smul.u32 2, %s42
        %s545 = smul.u32 2, %s42
        %s546 = smul.u32 2, %s42
        %v548 = vld [vmem:[%s537] sm:$0xff]
        %v549 = vld [vmem:[%s537 + $0x8] sm:$0xff]
        %v550 = vmul.f32 %v548, 6.6666665
        %v551 = vmul.f32 %v549, 6.6666665
        %v552 = vld [vmem:[%s448] sm:$0xff]
        %v553 = vld [vmem:[%s448 + $0x8] sm:$0xff]
        %v554 = vmul.f32 %v552, 0.85
        %v555 = vmul.f32 %v553, 0.85
        %v556 = vadd.f32 %v550, %v554
        %v557 = vadd.f32 %v551, %v555
        %v558 = vld [vmem:[%s457] sm:$0xff]
        %v559 = vld [vmem:[%s457 + $0x8] sm:$0xff]
        %v560 = vmul.f32 %v558, 0.9
        %v561 = vmul.f32 %v559, 0.9
        %v562 = vmul.f32 %v556, 10.0
        %v563 = vmul.f32 %v557, 10.0
        %v564 = vadd.f32 %v560, %v562
        %v565 = vadd.f32 %v561, %v563
        %v566 = vpack.c.bf16 %v565, %v564
        %v567 = vld [vmem:[%s3] sm:$0xf]
        %v568 = vld [vmem:[%s3 + $0x4] sm:$0xf]
        %v569 = vld [vmem:[%s3 + $0x8] sm:$0xf]
        %v570 = vld [vmem:[%s3 + $0xc] sm:$0xf]
        %v571 = vld [vmem:[%s3 + $0x10] sm:$0xf]
        %v572 = vld [vmem:[%s3 + $0x14] sm:$0xf]
        %v573 = vld [vmem:[%s3 + $0x18] sm:$0xf]
        %v574 = vld [vmem:[%s3 + $0x1c] sm:$0xf]
        %v575 = vld [vmem:[%s3 + $0x20] sm:$0xf]
        %v576 = vld [vmem:[%s3 + $0x24] sm:$0xf]
        %v577 = vld [vmem:[%s3 + $0x28] sm:$0xf]
        %v578 = vld [vmem:[%s3 + $0x2c] sm:$0xf]
        %v579 = vld [vmem:[%s3 + $0x30] sm:$0xf]
        %v580 = vld [vmem:[%s3 + $0x34] sm:$0xf]
        %v581 = vld [vmem:[%s3 + $0x38] sm:$0xf]
        %v582 = vld [vmem:[%s3 + $0x3c] sm:$0xf]
        %v583 = vld [vmem:[%s4] sm:$0x1]
        %v585 = vlaneseq
        %v586 = vshrl.u32 %v585, 7
        %v587 = vsub.s32 0, %v586
        %v588 = vrot.slane %v583, %v587
        %v606 = vunpack.c.l.b16 %v567
        %v607 = vunpack.c.l.b16 %v568
        %v608 = vunpack.c.l.b16 %v569
        %v609 = vunpack.c.l.b16 %v570
        %v610 = vunpack.c.l.b16 %v571
        %v611 = vunpack.c.l.b16 %v572
        %v612 = vunpack.c.l.b16 %v573
        %v613 = vunpack.c.l.b16 %v574
        %v614 = vunpack.c.l.b16 %v575
        %v615 = vunpack.c.l.b16 %v576
        %v616 = vunpack.c.l.b16 %v577
        %v617 = vunpack.c.l.b16 %v578
        %v618 = vunpack.c.l.b16 %v579
        %v619 = vunpack.c.l.b16 %v580
        %v620 = vunpack.c.l.b16 %v581
        %v621 = vunpack.c.l.b16 %v582
        %v622 = vpack.c.b16 %v607, %v606
        %v623 = vpack.c.b16 %v609, %v608
        %v624 = vpack.c.b16 %v611, %v610
        %v625 = vpack.c.b16 %v613, %v612
        %v626 = vpack.c.b16 %v615, %v614
        %v627 = vpack.c.b16 %v617, %v616
        %v628 = vpack.c.b16 %v619, %v618
        %v629 = vpack.c.b16 %v621, %v620
        %638 = vmatprep.subr.bf16.mxu0 0
        %639 = vmatpush1.bf16.msra.mxu0 %v629
        %640 = vmatprep.subr.bf16.mxu0 0
        %641 = vmatpush1.bf16.msra.mxu0 %v628
        %642 = vmatprep.subr.bf16.mxu0 0
        %643 = vmatpush1.bf16.msra.mxu0 %v627
        %644 = vmatprep.subr.bf16.mxu0 0
        %645 = vmatpush1.bf16.msra.mxu0 %v626
        %646 = vmatprep.subr.bf16.mxu0 0
        %647 = vmatpush1.bf16.msra.mxu0 %v625
        %648 = vmatprep.subr.bf16.mxu0 0
        %649 = vmatpush1.bf16.msra.mxu0 %v624
        %650 = vmatprep.subr.bf16.mxu0 0
        %651 = vmatpush1.bf16.msra.mxu0 %v623
        %652 = vmatprep.subr.bf16.mxu0 0
        %653 = vmatpush1.bf16.msra.mxu0 %v622
        %654 = vmatprep.subr.bf16.mxu0 0
        %655 = vmatpush2.bf16.msra.mxu0 0
        %656 = vmatprep.subr.bf16.mxu0 0
        %657 = vmatpush2.bf16.msra.mxu0 0
        %658 = vmatprep.subr.bf16.mxu0 0
        %659 = vmatpush2.bf16.msra.mxu0 0
        %660 = vmatprep.subr.bf16.mxu0 0
        %661 = vmatpush2.bf16.msra.mxu0 0
        %662 = vmatprep.subr.bf16.mxu0 0
        %663 = vmatpush2.bf16.msra.mxu0 0
        %664 = vmatprep.subr.bf16.mxu0 0
        %665 = vmatpush2.bf16.msra.mxu0 0
        %666 = vmatprep.subr.bf16.mxu0 0
        %667 = vmatpush2.bf16.msra.mxu0 0
        %668 = vmatprep.subr.bf16.mxu0 0
        %669 = vmatpush2.bf16.msra.mxu0 0
        %670 = vmatprep.mubr.bf16.mxu0 0
        %671 = vmatmul.mubr.bf16.gmra.mxu0 %v566
        %v672 = vpop.f32.mrf.mxu0
        %v673 = vadd.f32 %v588, %v672
        %v674 = vpop.f32.mrf.mxu0
        %v675 = vpop.f32.mrf.mxu0
        %v676 = vadd.f32 %v588, %v675
        %v677 = vpop.f32.mrf.mxu0
        %678 = vdwg.mxu0
        %v679 = vxor.u32 %v673, 2147483648
        %v680 = vxor.u32 %v676, 2147483648
        %v681 = vmul.f32 %v679, 1.442695
        %v682 = vpow.pop %v681
        %v683 = vmul.f32 %v680, 1.442695
        %v684 = vpow.pop %v683
        %v685 = vadd.f32 %v682, 1.0
        %v686 = vadd.f32 %v684, 1.0
        %v687 = vrcp.pop %v685
        %v688 = vmul.f32 1.0, %v687
        %v689 = vrcp.pop %v686
        %v690 = vmul.f32 1.0, %v689
        %v691 = vpack.c.bf16 %v690, %v688
        %v692 = vld [vmem:[%s5] sm:$0xf]
        %v693 = vld [vmem:[%s5 + $0x4] sm:$0xf]
        %v694 = vld [vmem:[%s5 + $0x8] sm:$0xf]
        %v695 = vld [vmem:[%s5 + $0xc] sm:$0xf]
        %v696 = vld [vmem:[%s5 + $0x10] sm:$0xf]
        %v697 = vld [vmem:[%s5 + $0x14] sm:$0xf]
        %v698 = vld [vmem:[%s5 + $0x18] sm:$0xf]
        %v699 = vld [vmem:[%s5 + $0x1c] sm:$0xf]
        %v700 = vld [vmem:[%s5 + $0x20] sm:$0xf]
        %v701 = vld [vmem:[%s5 + $0x24] sm:$0xf]
        %v702 = vld [vmem:[%s5 + $0x28] sm:$0xf]
        %v703 = vld [vmem:[%s5 + $0x2c] sm:$0xf]
        %v704 = vld [vmem:[%s5 + $0x30] sm:$0xf]
        %v705 = vld [vmem:[%s5 + $0x34] sm:$0xf]
        %v706 = vld [vmem:[%s5 + $0x38] sm:$0xf]
        %v707 = vld [vmem:[%s5 + $0x3c] sm:$0xf]
        %v708 = vld [vmem:[%s6] sm:$0x1]
        %v710 = vlaneseq
        %v711 = vshrl.u32 %v710, 7
        %v712 = vsub.s32 0, %v711
        %v713 = vrot.slane %v708, %v712
        %v731 = vunpack.c.l.b16 %v692
        %v732 = vunpack.c.l.b16 %v693
        %v733 = vunpack.c.l.b16 %v694
        %v734 = vunpack.c.l.b16 %v695
        %v735 = vunpack.c.l.b16 %v696
        %v736 = vunpack.c.l.b16 %v697
        %v737 = vunpack.c.l.b16 %v698
        %v738 = vunpack.c.l.b16 %v699
        %v739 = vunpack.c.l.b16 %v700
        %v740 = vunpack.c.l.b16 %v701
        %v741 = vunpack.c.l.b16 %v702
        %v742 = vunpack.c.l.b16 %v703
        %v743 = vunpack.c.l.b16 %v704
        %v744 = vunpack.c.l.b16 %v705
        %v745 = vunpack.c.l.b16 %v706
        %v746 = vunpack.c.l.b16 %v707
        %v747 = vpack.c.b16 %v732, %v731
        %v748 = vpack.c.b16 %v734, %v733
        %v749 = vpack.c.b16 %v736, %v735
        %v750 = vpack.c.b16 %v738, %v737
        %v751 = vpack.c.b16 %v740, %v739
        %v752 = vpack.c.b16 %v742, %v741
        %v753 = vpack.c.b16 %v744, %v743
        %v754 = vpack.c.b16 %v746, %v745
        %763 = vmatprep.subr.bf16.mxu0 0
        %764 = vmatpush1.bf16.msra.mxu0 %v754
        %765 = vmatprep.subr.bf16.mxu0 0
        %766 = vmatpush1.bf16.msra.mxu0 %v753
        %767 = vmatprep.subr.bf16.mxu0 0
        %768 = vmatpush1.bf16.msra.mxu0 %v752
        %769 = vmatprep.subr.bf16.mxu0 0
        %770 = vmatpush1.bf16.msra.mxu0 %v751
        %771 = vmatprep.subr.bf16.mxu0 0
        %772 = vmatpush1.bf16.msra.mxu0 %v750
        %773 = vmatprep.subr.bf16.mxu0 0
        %774 = vmatpush1.bf16.msra.mxu0 %v749
        %775 = vmatprep.subr.bf16.mxu0 0
        %776 = vmatpush1.bf16.msra.mxu0 %v748
        %777 = vmatprep.subr.bf16.mxu0 0
        %778 = vmatpush1.bf16.msra.mxu0 %v747
        %779 = vmatprep.subr.bf16.mxu0 0
        %780 = vmatpush2.bf16.msra.mxu0 0
        %781 = vmatprep.subr.bf16.mxu0 0
        %782 = vmatpush2.bf16.msra.mxu0 0
        %783 = vmatprep.subr.bf16.mxu0 0
        %784 = vmatpush2.bf16.msra.mxu0 0
        %785 = vmatprep.subr.bf16.mxu0 0
        %786 = vmatpush2.bf16.msra.mxu0 0
        %787 = vmatprep.subr.bf16.mxu0 0
        %788 = vmatpush2.bf16.msra.mxu0 0
        %789 = vmatprep.subr.bf16.mxu0 0
        %790 = vmatpush2.bf16.msra.mxu0 0
        %791 = vmatprep.subr.bf16.mxu0 0
        %792 = vmatpush2.bf16.msra.mxu0 0
        %793 = vmatprep.subr.bf16.mxu0 0
        %794 = vmatpush2.bf16.msra.mxu0 0
        %795 = vmatprep.mubr.bf16.mxu0 0
        %796 = vmatmul.mubr.bf16.gmra.mxu0 %v691
        %v797 = vpop.f32.mrf.mxu0
        %v798 = vadd.f32 %v713, %v797
        %v799 = vpop.f32.mrf.mxu0
        %v800 = vpop.f32.mrf.mxu0
        %v801 = vadd.f32 %v713, %v800
        %v802 = vpop.f32.mrf.mxu0
        %803 = vdwg.mxu0
        %vm804 = vcmp.gt.f32.partialorder %v673, 0.0
        %vm805 = vcmp.gt.f32.partialorder %v676, 0.0
        %v806 = vsel %vm804, 1, 0
        %v807 = vsel %vm805, 1, 0
        %v808 = vcvt.s32.f32 %v806
        %v809 = vcvt.s32.f32 %v807
        %810 = vst [vmem:[%s497] sm:$0xff] %v808
        %811 = vst [vmem:[%s497 + $0x8] sm:$0xff] %v809
        %812 = vst [vmem:[%s504] sm:$0xff] %v798
        %813 = vst [vmem:[%s504 + $0x8] sm:$0xff] %v801
        %814 = vst [vmem:[%s511] sm:$0xff] %v688
        %815 = vst [vmem:[%s511 + $0x8] sm:$0xff] %v690
        %816 = vst [vmem:[%s518] sm:$0xff] %v673
        %817 = vst [vmem:[%s518 + $0x8] sm:$0xff] %v676
        %818 = vst [vmem:[%s525] sm:$0xff] %v556
        %819 = vst [vmem:[%s525 + $0x8] sm:$0xff] %v557
        %820 = vst [vmem:[%s532] sm:$0xff] %v564
        %821 = vst [vmem:[%s532 + $0x8] sm:$0xff] %v565
        %s822 = sand.u32 %s212, 1
        %s823 = scalar_lea.sflag [#allocation4], %s822
        %s824 = sand.u32 %s212, 1
        %s825 = smul.addr %s824, 16
        %s826 = scalar_lea.vmem [#allocation7], %s825
        %s827 = sand.u32 %s42, 1
        %s828 = scalar_lea.sflag [#allocation9], %s827
        %s829 = sand.u32 %s238, 1
        %s830 = smul.addr %s829, 16
        %s831 = scalar_lea.vmem [#allocation8], %s830
        %s832 = sand.u32 %s42, 1
        %s833 = scalar_lea.sflag [#allocation9], %s832
        %s834 = sand.u32 %s264, 1
        %s835 = smul.addr %s834, 16
        %s836 = scalar_lea.vmem [#allocation10], %s835
        %s837 = sand.u32 %s42, 1
        %s838 = scalar_lea.sflag [#allocation12], %s837
        %s839 = sand.u32 %s290, 1
        %s840 = smul.addr %s839, 16
        %s841 = scalar_lea.vmem [#allocation11], %s840
        %s842 = sand.u32 %s42, 1
        %s843 = scalar_lea.sflag [#allocation12], %s842
        %s844 = sand.u32 %s316, 1
        %s845 = smul.addr %s844, 16
        %s846 = scalar_lea.vmem [#allocation13], %s845
        %s847 = sand.u32 %s342, 1
        %s848 = scalar_lea.sflag [#allocation15], %s847
        %s849 = sand.u32 %s342, 1
        %s850 = smul.addr %s849, 16
        %s851 = scalar_lea.vmem [#allocation14], %s850
        // Predicated region
        $region57: #{tpu_custom_call.1} parent=47 // pred_check
          %p852 = pneg %p222
        $region58: #{tpu_custom_call.1} parent=47 // pred_check_branch
          %854 = sbr.rel (%p852) target = $region60
        $region59: #{tpu_custom_call.1} parent=47 // pred_region
          %s855 = smul.u32 2, %s42
          %s857 = ssub.s32 256, 256
          %858 = vsyncadd %s823, %s857
          %s859 = smul.addr %s855, 128
          %s860 = scalar_lea.hbm %s7, %s859
          %s861 = sshll.u32 %s826, 4
          %s862 = int_to_ptr.vmem [resolvable:$true] %s861
          %867 = dma.vmem_to_hbm [thread:$0]  %s862, 256, %s860, %s823, 128, 128, 8
        $region60: #{tpu_custom_call.1} parent=47 // pred_fallthru
          _
        // Predicated region
        $region61: #{tpu_custom_call.1} parent=47 // pred_check
          %p868 = pneg %p248
        $region62: #{tpu_custom_call.1} parent=47 // pred_check_branch
          %870 = sbr.rel (%p868) target = $region64
        $region63: #{tpu_custom_call.1} parent=47 // pred_region
          %s871 = smul.u32 2, %s42
          %s873 = ssub.s32 256, 256
          %874 = vsyncadd %s828, %s873
          %s875 = smul.addr %s871, 128
          %s876 = scalar_lea.hbm %s8, %s875
          %s877 = sshll.u32 %s831, 4
          %s878 = int_to_ptr.vmem [resolvable:$true] %s877
          %883 = dma.vmem_to_hbm [thread:$0]  %s878, 256, %s876, %s828, 128, 128, 8
        $region64: #{tpu_custom_call.1} parent=47 // pred_fallthru
          _
        // Predicated region
        $region65: #{tpu_custom_call.1} parent=47 // pred_check
          %p884 = pneg %p274
        $region66: #{tpu_custom_call.1} parent=47 // pred_check_branch
          %886 = sbr.rel (%p884) target = $region68
        $region67: #{tpu_custom_call.1} parent=47 // pred_region
          %s887 = smul.u32 2, %s42
          %s889 = ssub.s32 256, 256
          %890 = vsyncadd %s833, %s889
          %s891 = smul.addr %s887, 128
          %s892 = scalar_lea.hbm %s9, %s891
          %s893 = sshll.u32 %s836, 4
          %s894 = int_to_ptr.vmem [resolvable:$true] %s893
          %899 = dma.vmem_to_hbm [thread:$0]  %s894, 256, %s892, %s833, 128, 128, 8
        $region68: #{tpu_custom_call.1} parent=47 // pred_fallthru
          _
        // Predicated region
        $region69: #{tpu_custom_call.1} parent=47 // pred_check
          %p900 = pneg %p300
        $region70: #{tpu_custom_call.1} parent=47 // pred_check_branch
          %902 = sbr.rel (%p900) target = $region72
        $region71: #{tpu_custom_call.1} parent=47 // pred_region
          %s903 = smul.u32 2, %s42
          %s905 = ssub.s32 256, 256
          %906 = vsyncadd %s838, %s905
          %s907 = smul.addr %s903, 128
          %s908 = scalar_lea.hbm %s10, %s907
          %s909 = sshll.u32 %s841, 4
          %s910 = int_to_ptr.vmem [resolvable:$true] %s909
          %915 = dma.vmem_to_hbm [thread:$0]  %s910, 256, %s908, %s838, 128, 128, 8
        $region72: #{tpu_custom_call.1} parent=47 // pred_fallthru
          _
        // Predicated region
        $region73: #{tpu_custom_call.1} parent=47 // pred_check
          %p916 = pneg %p326
        $region74: #{tpu_custom_call.1} parent=47 // pred_check_branch
          %918 = sbr.rel (%p916) target = $region76
        $region75: #{tpu_custom_call.1} parent=47 // pred_region
          %s919 = smul.u32 2, %s42
          %s921 = ssub.s32 256, 256
          %922 = vsyncadd %s843, %s921
          %s923 = smul.addr %s919, 128
          %s924 = scalar_lea.hbm %s11, %s923
          %s925 = sshll.u32 %s846, 4
          %s926 = int_to_ptr.vmem [resolvable:$true] %s925
          %931 = dma.vmem_to_hbm [thread:$0]  %s926, 256, %s924, %s843, 128, 128, 8
        $region76: #{tpu_custom_call.1} parent=47 // pred_fallthru
          _
        // Predicated region
        $region77: #{tpu_custom_call.1} parent=47 // pred_check
          %p932 = pneg %p352
        $region78: #{tpu_custom_call.1} parent=47 // pred_check_branch
          %934 = sbr.rel (%p932) target = $region80
        $region79: #{tpu_custom_call.1} parent=47 // pred_region
          %s935 = smul.u32 2, %s42
          %s937 = ssub.s32 256, 256
          %938 = vsyncadd %s848, %s937
          %s939 = smul.addr %s935, 128
          %s940 = scalar_lea.hbm %s12, %s939
          %s941 = sshll.u32 %s851, 4
          %s942 = int_to_ptr.vmem [resolvable:$true] %s941
          %947 = dma.vmem_to_hbm [thread:$0]  %s942, 256, %s940, %s848, 128, 128, 8
        $region80: #{tpu_custom_call.1} parent=47 // pred_fallthru
          _
      $region48: #{tpu_custom_call.1} parent=5 // pred_fallthru
        _
      %p948 = scmp.le.s32.totalorder 2, %s37
      // Predicated region
      $region81: #{tpu_custom_call.1} parent=5 // pred_check
        %p949 = pneg %p948
      $region82: #{tpu_custom_call.1} parent=5 // pred_check_branch
        %951 = sbr.rel (%p949) target = $region84
      $region83: #{tpu_custom_call.1} parent=5 // pred_region
        %s952 = ssub.s32 %s37, 2
        // Predicated region
        $region85: #{tpu_custom_call.1} parent=83 // pred_check
          %p953 = pneg %p228
        $region86: #{tpu_custom_call.1} parent=83 // pred_check_branch
          %955 = sbr.rel (%p953) target = $region88
        $region87: #{tpu_custom_call.1} parent=83 // pred_region
          %s956 = sand.u32 %s213, 1
          %s957 = scalar_lea.sflag [#allocation4], %s956
          %s958 = sand.u32 %s213, 1
          %s959 = smul.addr %s958, 16
          %s960 = scalar_lea.vmem [#allocation7], %s959
          %961 = dma.done %s957, 256
        $region88: #{tpu_custom_call.1} parent=83 // pred_fallthru
          _
        // Predicated region
        $region89: #{tpu_custom_call.1} parent=83 // pred_check
          %p962 = pneg %p254
        $region90: #{tpu_custom_call.1} parent=83 // pred_check_branch
          %964 = sbr.rel (%p962) target = $region92
        $region91: #{tpu_custom_call.1} parent=83 // pred_region
          %s965 = sand.u32 %s43, 1
          %s966 = scalar_lea.sflag [#allocation9], %s965
          %s967 = sand.u32 %s239, 1
          %s968 = smul.addr %s967, 16
          %s969 = scalar_lea.vmem [#allocation8], %s968
          %970 = dma.done %s966, 256
        $region92: #{tpu_custom_call.1} parent=83 // pred_fallthru
          _
        // Predicated region
        $region93: #{tpu_custom_call.1} parent=83 // pred_check
          %p971 = pneg %p280
        $region94: #{tpu_custom_call.1} parent=83 // pred_check_branch
          %973 = sbr.rel (%p971) target = $region96
        $region95: #{tpu_custom_call.1} parent=83 // pred_region
          %s974 = sand.u32 %s43, 1
          %s975 = scalar_lea.sflag [#allocation9], %s974
          %s976 = sand.u32 %s265, 1
          %s977 = smul.addr %s976, 16
          %s978 = scalar_lea.vmem [#allocation10], %s977
          %979 = dma.done %s975, 256
        $region96: #{tpu_custom_call.1} parent=83 // pred_fallthru
          _
        // Predicated region
        $region97: #{tpu_custom_call.1} parent=83 // pred_check
          %p980 = pneg %p306
        $region98: #{tpu_custom_call.1} parent=83 // pred_check_branch
          %982 = sbr.rel (%p980) target = $region100
        $region99: #{tpu_custom_call.1} parent=83 // pred_region
          %s983 = sand.u32 %s43, 1
          %s984 = scalar_lea.sflag [#allocation12], %s983
          %s985 = sand.u32 %s291, 1
          %s986 = smul.addr %s985, 16
          %s987 = scalar_lea.vmem [#allocation11], %s986
          %988 = dma.done %s984, 256
        $region100: #{tpu_custom_call.1} parent=83 // pred_fallthru
          _
        // Predicated region
        $region101: #{tpu_custom_call.1} parent=83 // pred_check
          %p989 = pneg %p332
        $region102: #{tpu_custom_call.1} parent=83 // pred_check_branch
          %991 = sbr.rel (%p989) target = $region104
        $region103: #{tpu_custom_call.1} parent=83 // pred_region
          %s992 = sand.u32 %s43, 1
          %s993 = scalar_lea.sflag [#allocation12], %s992
          %s994 = sand.u32 %s317, 1
          %s995 = smul.addr %s994, 16
          %s996 = scalar_lea.vmem [#allocation13], %s995
          %997 = dma.done %s993, 256
        $region104: #{tpu_custom_call.1} parent=83 // pred_fallthru
          _
        // Predicated region
        $region105: #{tpu_custom_call.1} parent=83 // pred_check
          %p998 = pneg %p358
        $region106: #{tpu_custom_call.1} parent=83 // pred_check_branch
          %1000 = sbr.rel (%p998) target = $region108
        $region107: #{tpu_custom_call.1} parent=83 // pred_region
          %s1001 = sand.u32 %s343, 1
          %s1002 = scalar_lea.sflag [#allocation15], %s1001
          %s1003 = sand.u32 %s343, 1
          %s1004 = smul.addr %s1003, 16
          %s1005 = scalar_lea.vmem [#allocation14], %s1004
          %1006 = dma.done %s1002, 256
        $region108: #{tpu_custom_call.1} parent=83 // pred_fallthru
          _
      $region84: #{tpu_custom_call.1} parent=5 // pred_fallthru
        _
    $region6: #{tpu_custom_call.1} parent=1 // loop_footer
      %s41 = sadd.s32 1, %s37
    $region7: #{tpu_custom_call.1} parent=1 // loop_footer_branch
      %36 = sbr.rel target = $region3
    $region8: #{tpu_custom_call.1} parent=1 // loop_exit
      _
    %1007 = vsyncpa [#allocation3], 1
    %s1008 = scalar_lea.sflag [#allocation3], 1
    %1009 = vsyncpa %s1008, 1
    %1010 = vsyncpa [#allocation6], 1
    %s1011 = scalar_lea.sflag [#allocation6], 1
    %1012 = vsyncpa %s1011, 1
    %1013 = vsyncpa [#allocation4], 1
    %s1014 = scalar_lea.sflag [#allocation4], 1
    %1015 = vsyncpa %s1014, 1
    %1016 = vsyncpa [#allocation9], 1
    %s1017 = scalar_lea.sflag [#allocation9], 1
    %1018 = vsyncpa %s1017, 1
    %1019 = vsyncpa [#allocation12], 1
    %s1020 = scalar_lea.sflag [#allocation12], 1
    %1021 = vsyncpa %s1020, 1
    %1022 = vsyncpa [#allocation15], 1
    %s1023 = scalar_lea.sflag [#allocation15], 1
    %1024 = vsyncpa %s1023, 1

</llo_original>
